<compile_context>
chip_gen: v6e
topology: v6e:2x2x1
jax: 0.10.0
libtpu: 0.0.40
codegen_flags: <defaults>
</compile_context>

<pallas_src>
import functools
import math

import jax
import jax.numpy as jnp
from jax.experimental import pallas as pl
from jax.experimental.pallas import tpu as pltpu

# ---- model hyperparameters (from the PyTorch script) ----
BLOCK_SIZE = 8      # block_size
N_EMBD = 32         # n_embd
VOCAB_SIZE = 65     # vocab_size (len(set(text)) for tiny-shakespeare); synthetic choice

_NEG_BIG = -1e30    # "minus infinity" for padded logit columns (bf16-representable)
_TILE_TARGET = 512  # target rows per grid step (multiple of 8; clamped to B*T)


def _round_up(x, m):
    return ((x + m - 1) // m) * m


def _lcm(a, b):
    return a * b // math.gcd(a, b)


def _make_onehot(idx_col, pos_col, V, tile, K):
    """(tile, K) bf16 one-hot with two hot lanes per row: token id and V + position."""
    col = jax.lax.broadcasted_iota(jnp.int32, (tile, K), 1)
    hit = (col == idx_col) | (col == V + pos_col)
    # bool -> f32 -> bf16 (exact 0/1 values, MXU-native operand dtype)
    return hit.astype(jnp.float32).astype(jnp.bfloat16)


def _logits_kernel(idx_ref, pos_ref, mp_ref, logits_ref, *, V):
    K, _ = mp_ref.shape
    tile = idx_ref.shape[0]
    onehot = _make_onehot(idx_ref[...], pos_ref[...], V, tile, K)
    logits_ref[...] = jnp.dot(onehot, mp_ref[...],
                              preferred_element_type=jnp.float32)


def _logits_loss_kernel(idx_ref, tgt_ref, pos_ref, mp_ref, logits_ref, nll_ref, *, V):
    K, N = mp_ref.shape
    tile = idx_ref.shape[0]
    onehot = _make_onehot(idx_ref[...], pos_ref[...], V, tile, K)
    logits = jnp.dot(onehot, mp_ref[...], preferred_element_type=jnp.float32)
    logits_ref[...] = logits                                   # lane-dense (tile, 128) store

    # cross-entropy per row; padded columns already hold ~-1e30 so they drop out
    m = jnp.max(logits, axis=-1, keepdims=True)                # XLU lane reduce
    lse = m + jnp.log(jnp.sum(jnp.exp(logits - m), axis=-1, keepdims=True))  # EUP exp/log
    colN = jax.lax.broadcasted_iota(jnp.int32, (tile, N), 1)
    tgt_oh = (colN == tgt_ref[...]).astype(jnp.float32)
    tgt_logit = jnp.sum(tgt_oh * logits, axis=-1, keepdims=True)
    nll_ref[...] = lse - tgt_logit                             # (tile, 1)


class BigramLanguageModelPallas:
    def __init__(self, key, vocab_size=VOCAB_SIZE, n_embd=N_EMBD,
                 block_size=BLOCK_SIZE):
        self.vocab_size = vocab_size
        self.n_embd = n_embd
        self.block_size = block_size
        k1, k2, k3, k4 = jax.random.split(key, 4)
        # nn.Embedding default init: N(0, 1)
        self.tok_table = jax.random.normal(k1, (vocab_size, n_embd), jnp.float32)
        self.pos_table = jax.random.normal(k2, (block_size, n_embd), jnp.float32)
        # nn.Linear default init: U(-1/sqrt(fan_in), 1/sqrt(fan_in)); weight stored as (C, V)
        bound = 1.0 / (n_embd ** 0.5)
        self.w = jax.random.uniform(k3, (n_embd, vocab_size), jnp.float32,
                                    minval=-bound, maxval=bound)
        self.b = jax.random.uniform(k4, (1, vocab_size), jnp.float32,
                                    minval=-bound, maxval=bound)

        # Fused bigram table (f32 precompute once at init, bf16 storage for the MXU):
        #   rows [0, V)              : tok_table @ W + b   (token contribution, bias folded)
        #   rows [V, V + block_size) : pos_table @ W       (position contribution)
        #   padded logit columns of the token rows hold -1e30 so padded logits act
        #   as -inf in the softmax without any in-kernel masking.
        V, T = vocab_size, block_size
        K = _round_up(V + T, 128)     # contraction dim (one-hot width)
        N = _round_up(V, 128)         # lane-dense logits width
        M = self.tok_table @ self.w + self.b       # (V, V)
        P = self.pos_table @ self.w                # (block_size, V)
        mp = jnp.zeros((K, N), jnp.float32)
        mp = mp.at[:V, :V].set(M)
        mp = mp.at[V:V + T, :V].set(P)
        if N > V:
            mp = mp.at[:V, V:].set(_NEG_BIG)
        self.mp_table = mp.astype(jnp.bfloat16)
        self.k_pad = K
        self.n_pad = N

    def __call__(self, idx, targets=None):
        B, T = idx.shape
        assert T <= self.block_size
        V = self.vocab_size
        K, N = self.k_pad, self.n_pad
        BT = B * T

        # Tile the flattened B*T rows; tiles are multiples of both 8 (sublane) and T
        # (so position = local_row % T is tile-invariant and can be precomputed once).
        base = _lcm(T, 8)
        tile = min(_round_up(_TILE_TARGET, base), _round_up(BT, base))
        bt_pad = _round_up(BT, tile)
        grid = (bt_pad // tile,)

        idx_flat = idx.reshape(BT, 1).astype(jnp.int32)
        idx_pad = jnp.pad(idx_flat, ((0, bt_pad - BT), (0, 0)))
        pos_ids = (jnp.arange(tile, dtype=jnp.int32) % T).reshape(tile, 1)

        row_spec = pl.BlockSpec((tile, 1), lambda i: (i, 0))     # per-tile rows
        const_col = pl.BlockSpec((tile, 1), lambda i: (0, 0))    # same block every tile
        mp_spec = pl.BlockSpec((K, N), lambda i: (0, 0))         # resident fused table
        logits_spec = pl.BlockSpec((tile, N), lambda i: (i, 0))  # lane-dense output
        cparams = pltpu.CompilerParams(dimension_semantics=("parallel",))

        if targets is None:
            logits_full = pl.pallas_call(
                functools.partial(_logits_kernel, V=V),
                grid=grid,
                in_specs=[row_spec, const_col, mp_spec],
                out_specs=logits_spec,
                out_shape=jax.ShapeDtypeStruct((bt_pad, N), jnp.float32),
                compiler_params=cparams,
            )(idx_pad, pos_ids, self.mp_table)
            return logits_full[:BT, :V].reshape(B, T, V), None

        tgt_flat = targets.reshape(BT, 1).astype(jnp.int32)
        tgt_pad = jnp.pad(tgt_flat, ((0, bt_pad - BT), (0, 0)))
        logits_full, nll = pl.pallas_call(
            functools.partial(_logits_loss_kernel, V=V),
            grid=grid,
            in_specs=[row_spec, row_spec, const_col, mp_spec],
            out_specs=(logits_spec, row_spec),
            out_shape=(jax.ShapeDtypeStruct((bt_pad, N), jnp.float32),
                       jax.ShapeDtypeStruct((bt_pad, 1), jnp.float32)),
            compiler_params=cparams,
        )(idx_pad, tgt_pad, pos_ids, self.mp_table)
        # PyTorch returns the .view(B*T, C) logits when targets are provided
        logits = logits_full[:BT, :V]
        loss = jnp.mean(nll[:BT, 0])
        return logits, loss

    # TODO(synk): generate() (torch.multinomial sampling loop) is host-side control
    # flow + PRNG sampling and is intentionally not implemented as a Pallas kernel.


def _reference(model, idx, targets):
    """Pure-JAX f32 reference with PyTorch forward semantics."""
    B, T = idx.shape
    tok = model.tok_table[idx]                    # (B, T, C)
    pos = model.pos_table[:T]                     # (T, C)
    x = tok + pos[None]
    logits = x @ model.w + model.b[0]             # (B, T, V)
    logits2 = logits.reshape(B * T, -1)
    logp = jax.nn.log_softmax(logits2, axis=-1)
    loss = -jnp.mean(logp[jnp.arange(B * T), targets.reshape(-1)])
    return logits2, loss


if __name__ == "__main__":
    key = jax.random.PRNGKey(0)
    k_model, k_idx, k_tgt = jax.random.split(key, 3)

    model = BigramLanguageModelPallas(k_model)

    B, T = 2, BLOCK_SIZE
    idx = jax.random.randint(k_idx, (B, T), 0, VOCAB_SIZE, dtype=jnp.int32)
    targets = jax.random.randint(k_tgt, (B, T), 0, VOCAB_SIZE, dtype=jnp.int32)

    # with targets: (B*T, V) logits + scalar loss
    logits, loss = model(idx, targets)
    jax.block_until_ready((logits, loss))
    assert logits.shape == (B * T, VOCAB_SIZE)

    # without targets: (B, T, V) logits, loss None
    logits_nt, loss_nt = model(idx, None)
    jax.block_until_ready(logits_nt)
    assert loss_nt is None and logits_nt.shape == (B, T, VOCAB_SIZE)

    # correctness check vs pure-JAX f32 reference (fused table is bf16 -> ~1e-2 abs err)
    ref_logits, ref_loss = _reference(model, idx, targets)
    assert jnp.allclose(logits, ref_logits, atol=5e-2, rtol=5e-2)
    assert jnp.allclose(logits_nt.reshape(B * T, -1), ref_logits, atol=5e-2, rtol=5e-2)
    assert jnp.allclose(loss, ref_loss, atol=5e-2, rtol=5e-2)
    assert bool(jnp.isfinite(loss))

    # larger-batch smoke test to exercise the multi-tile grid path (tile=512 rows)
    kb_idx, kb_tgt = jax.random.split(jax.random.PRNGKey(1), 2)
    Bb = 256
    idx_b = jax.random.randint(kb_idx, (Bb, T), 0, VOCAB_SIZE, dtype=jnp.int32)
    tgt_b = jax.random.randint(kb_tgt, (Bb, T), 0, VOCAB_SIZE, dtype=jnp.int32)
    logits_b, loss_b = model(idx_b, tgt_b)
    jax.block_until_ready((logits_b, loss_b))
    ref_logits_b, ref_loss_b = _reference(model, idx_b, tgt_b)
    assert jnp.allclose(logits_b, ref_logits_b, atol=5e-2, rtol=5e-2)
    assert jnp.allclose(loss_b, ref_loss_b, atol=5e-2, rtol=5e-2)

    print("KERNEL_OK")
</pallas_src>

<mosaic_0001>
module attributes {stable_mosaic.version = 11 : i64} {
  func.func @_logits_loss_kernel(%arg0: i32, %arg1: memref<16x1xi32, #tpu.memory_space<vmem>>, %arg2: memref<16x1xi32, #tpu.memory_space<vmem>>, %arg3: memref<16x1xi32, #tpu.memory_space<vmem>>, %arg4: memref<128x128xbf16, #tpu.memory_space<vmem>>, %arg5: memref<16x128xf32, #tpu.memory_space<vmem>>, %arg6: memref<16x1xf32, #tpu.memory_space<vmem>>) attributes {dimension_semantics = [#tpu.dimension_semantics<parallel>], iteration_bounds = array<i64: 1>, scalar_prefetch = 0 : i64, scratch_operands = 0 : i64, tpu.core_type = #tpu.core_type<tc>, window_params = [{transform_indices = @transform_0, window_bounds = array<i64: 16, 1>}, {transform_indices = @transform_1, window_bounds = array<i64: 16, 1>}, {pipeline_mode = #tpu.pipeline_mode<synchronous>, transform_indices = @transform_2, window_bounds = array<i64: 16, 1>}, {pipeline_mode = #tpu.pipeline_mode<synchronous>, transform_indices = @transform_3, window_bounds = array<i64: 128, 128>}, {transform_indices = @transform_4, window_bounds = array<i64: 16, 128>}, {transform_indices = @transform_5, window_bounds = array<i64: 16, 1>}]} {
    %c0 = arith.constant 0 : index
    %c0_0 = arith.constant 0 : index
    %0 = vector.load %arg1[%c0, %c0_0] : memref<16x1xi32, #tpu.memory_space<vmem>>, vector<16x1xi32>
    %c0_1 = arith.constant 0 : index
    %c0_2 = arith.constant 0 : index
    %1 = vector.load %arg3[%c0_1, %c0_2] : memref<16x1xi32, #tpu.memory_space<vmem>>, vector<16x1xi32>
    %2 = tpu.iota {dimensions = array<i32: 1>} : vector<16x128xi32>
    %3 = vector.broadcast %0 : vector<16x1xi32> to vector<16x128xi32>
    %4 = arith.cmpi eq, %2, %3 : vector<16x128xi32>
    %c65_i32 = arith.constant 65 : i32
    %5 = vector.broadcast %c65_i32 : i32 to vector<16x1xi32>
    %6 = arith.addi %5, %1 : vector<16x1xi32>
    %7 = vector.broadcast %6 : vector<16x1xi32> to vector<16x128xi32>
    %8 = arith.cmpi eq, %2, %7 : vector<16x128xi32>
    %9 = arith.ori %4, %8 : vector<16x128xi1>
    %10 = arith.extui %9 : vector<16x128xi1> to vector<16x128xi32>
    %11 = arith.sitofp %10 : vector<16x128xi32> to vector<16x128xf32>
    %12 = arith.truncf %11 : vector<16x128xf32> to vector<16x128xbf16>
    %c0_3 = arith.constant 0 : index
    %c0_4 = arith.constant 0 : index
    %13 = vector.load %arg4[%c0_3, %c0_4] : memref<128x128xbf16, #tpu.memory_space<vmem>>, vector<128x128xbf16>
    %cst = arith.constant dense<0.000000e+00> : vector<16x128xf32>
    %14 = tpu.matmul %12, %13, %cst {dimension_numbers = #tpu.dot_dimension_numbers<[1], [0], [0], [1], [0, 0, 1, 1], [], []>} : vector<16x128xbf16>, vector<128x128xbf16>, vector<16x128xf32> -> vector<16x128xf32>
    %c0_5 = arith.constant 0 : index
    %c0_6 = arith.constant 0 : index
    %15 = vector.load %arg5[%c0_5, %c0_6] : memref<16x128xf32, #tpu.memory_space<vmem>>, vector<16x128xf32>
    tpu.vector_store %arg5[%c0_5, %c0_6], %14 {strides = array<i32>} : memref<16x128xf32, #tpu.memory_space<vmem>>, vector<16x128xf32>,
    %cst_7 = arith.constant dense<0xFF800000> : vector<16xf32>
    %16 = vector.multi_reduction <maximumf>, %14, %cst_7 [1] : vector<16x128xf32> to vector<16xf32>
    %17 = vector.shape_cast %16 : vector<16xf32> to vector<16x1xf32>
    %18 = vector.broadcast %17 : vector<16x1xf32> to vector<16x128xf32>
    %19 = arith.subf %14, %18 : vector<16x128xf32>
    %20 = math.exp %19 : vector<16x128xf32>
    %cst_8 = arith.constant dense<0.000000e+00> : vector<16xf32>
    %21 = vector.multi_reduction <add>, %20, %cst_8 [1] : vector<16x128xf32> to vector<16xf32>
    %22 = vector.shape_cast %21 : vector<16xf32> to vector<16x1xf32>
    %23 = math.log %22 : vector<16x1xf32>
    %24 = arith.addf %17, %23 : vector<16x1xf32>
    %25 = tpu.iota {dimensions = array<i32: 1>} : vector<16x128xi32>
    %c0_9 = arith.constant 0 : index
    %c0_10 = arith.constant 0 : index
    %26 = vector.load %arg2[%c0_9, %c0_10] : memref<16x1xi32, #tpu.memory_space<vmem>>, vector<16x1xi32>
    %27 = vector.broadcast %26 : vector<16x1xi32> to vector<16x128xi32>
    %28 = arith.cmpi eq, %25, %27 : vector<16x128xi32>
    %29 = arith.extui %28 : vector<16x128xi1> to vector<16x128xi32>
    %30 = arith.sitofp %29 : vector<16x128xi32> to vector<16x128xf32>
    %31 = arith.mulf %30, %14 : vector<16x128xf32>
    %cst_11 = arith.constant dense<0.000000e+00> : vector<16xf32>
    %32 = vector.multi_reduction <add>, %31, %cst_11 [1] : vector<16x128xf32> to vector<16xf32>
    %33 = vector.shape_cast %32 : vector<16xf32> to vector<16x1xf32>
    %34 = arith.subf %24, %33 : vector<16x1xf32>
    %c0_12 = arith.constant 0 : index
    %c0_13 = arith.constant 0 : index
    %35 = vector.load %arg6[%c0_12, %c0_13] : memref<16x1xf32, #tpu.memory_space<vmem>>, vector<16x1xf32>
    tpu.vector_store %arg6[%c0_12, %c0_13], %34 {strides = array<i32>} : memref<16x1xf32, #tpu.memory_space<vmem>>, vector<16x1xf32>,
    return
  }
  func.func @transform_0(%arg0: i32) -> (i32, i32) {
    %c0_i32 = arith.constant 0 : i32
    %c0_i32_0 = arith.constant 0 : i32
    return %arg0, %c0_i32 : i32, i32
  }
  func.func @transform_1(%arg0: i32) -> (i32, i32) {
    %c0_i32 = arith.constant 0 : i32
    %c0_i32_0 = arith.constant 0 : i32
    return %arg0, %c0_i32 : i32, i32
  }
  func.func @transform_2(%arg0: i32) -> (i32, i32) {
    %c0_i32 = arith.constant 0 : i32
    %c0_i32_0 = arith.constant 0 : i32
    %c0_i32_1 = arith.constant 0 : i32
    return %c0_i32, %c0_i32_0 : i32, i32
  }
  func.func @transform_3(%arg0: i32) -> (i32, i32) {
    %c0_i32 = arith.constant 0 : i32
    %c0_i32_0 = arith.constant 0 : i32
    %c0_i32_1 = arith.constant 0 : i32
    return %c0_i32, %c0_i32_0 : i32, i32
  }
  func.func @transform_4(%arg0: i32) -> (i32, i32) {
    %c0_i32 = arith.constant 0 : i32
    %c0_i32_0 = arith.constant 0 : i32
    return %arg0, %c0_i32 : i32, i32
  }
  func.func @transform_5(%arg0: i32) -> (i32, i32) {
    %c0_i32 = arith.constant 0 : i32
    %c0_i32_0 = arith.constant 0 : i32
    return %arg0, %c0_i32 : i32, i32
  }
}

</mosaic_0001>

<llo_original>
// kernel: tpu_custom_call.1
$region0: #{tpu_custom_call.1}
  #allocation0 [shape = 'u32[]', space=smem, size = 0x4, offset = 0x4, fixed_abs, tag = 'smem constant byte address 0x4 - core index']
  #allocation1 [shape = 'u32[144,128]{1,0:T(1,128)}', space=vmem, size = 0x12000, scoped, tag = 'internal scratch']
  %s0 = inlined_call_operand.vmem [shape: s32[16,1], index: 0, kind: input, shape index: {}]
  %s1 = inlined_call_operand.vmem [shape: s32[16,1], index: 1, kind: input, shape index: {}]
  %s2 = inlined_call_operand.vmem [shape: s32[16,1], index: 2, kind: input, shape index: {}]
  %s3 = inlined_call_operand.hbm [shape: bf16[128,128], index: 3, kind: input, shape index: {}]
  %s4 = inlined_call_operand.hbm [shape: f32[16,128], index: 4, kind: output, shape index: {0}]
  %s5 = inlined_call_operand.vmem [shape: f32[16,1], index: 5, kind: output, shape index: {1}]
  %6 = xla_tuple %s4, %s5
  %s7 = sld [smem:[#allocation0]]
  $region38: #{tpu_custom_call.1} parent=0
    _
  %s9 = ssub.s32 1, %s7
  %s10 = scalar_select 0, %s9, %s7
  $region1: #{tpu_custom_call.1} parent=0
    #allocation2 [shape = 'u8[32768]{0}', space=vmem, size = 0x8000, scoped, tag = 'input window, operand 3, single buffered']
    #allocation3 [shape = 's32[1]{0}', space=sflag, size = 0x4, scoped, tag = 'scoped memory for tpu_custom_call.1']
    #allocation4 [shape = 's32[1]{0}', space=sflag, size = 0x4, scoped, tag = 'scoped memory for tpu_custom_call.1']
    #allocation5 [shape = 'u8[8192]{0}', space=vmem, size = 0x2000, scoped, tag = 'output window, operand 0, single buffered']
    %11 = vsyncpa [#allocation3], 0
    %12 = vsyncpa [#allocation4], 0
    // Predicated region
    $region2: #{tpu_custom_call.1} parent=1 // pred_check
      _
    $region3: #{tpu_custom_call.1} parent=1 // pred_check_branch
      %14 = sbr.rel (0) target = $region5
    $region4: #{tpu_custom_call.1} parent=1 // pred_region
      _
    $region5: #{tpu_custom_call.1} parent=1 // pred_fallthru
      _
    // Predicated region
    $region6: #{tpu_custom_call.1} parent=1 // pred_check
      _
    $region7: #{tpu_custom_call.1} parent=1 // pred_check_branch
      %16 = sbr.rel (0) target = $region9
    $region8: #{tpu_custom_call.1} parent=1 // pred_region
      _
    $region9: #{tpu_custom_call.1} parent=1 // pred_fallthru
      _
    // Predicated region
    $region10: #{tpu_custom_call.1} parent=1 // pred_check
      _
    $region11: #{tpu_custom_call.1} parent=1 // pred_check_branch
      %18 = sbr.rel (0) target = $region13
    $region12: #{tpu_custom_call.1} parent=1 // pred_region
      _
    $region13: #{tpu_custom_call.1} parent=1 // pred_fallthru
      _
    // Predicated region
    $region14: #{tpu_custom_call.1} parent=1 // pred_check
      _
    $region15: #{tpu_custom_call.1} parent=1 // pred_check_branch
      %20 = sbr.rel (0) target = $region17
    $region16: #{tpu_custom_call.1} parent=1 // pred_region
      %s22 = ssub.s32 1024, 1024
      %23 = vsyncadd [#allocation3], %s22
      %s24 = sshll.u32 [#allocation2], 4
      %s25 = int_to_ptr.vmem [resolvable:$true] %s24
      %30 = dma.hbm_to_vmem [thread:$0]  %s3, 1024, %s25, [#allocation3], 64, 64, 4
    $region17: #{tpu_custom_call.1} parent=1 // pred_fallthru
      _
    // Predicated region
    $region18: #{tpu_custom_call.1} parent=1 // pred_check
      _
    $region19: #{tpu_custom_call.1} parent=1 // pred_check_branch
      %32 = sbr.rel (0) target = $region21
    $region20: #{tpu_custom_call.1} parent=1 // pred_region
      %33 = dma.done [#allocation3], 1024
    $region21: #{tpu_custom_call.1} parent=1 // pred_fallthru
      _
    %v35 = vld [vmem:[%s0] sm:$0xff]
    %v36 = vld [vmem:[%s0 + $0x8] sm:$0xff]
    %v37 = vld [vmem:[%s2] sm:$0xff]
    %v38 = vld [vmem:[%s2 + $0x8] sm:$0xff]
    %v39 = vlaneseq
    %v40 = vand.u32 %v39, 127
    %41 = vset.pattern.permute.xlu0 0
    %42 = vperm.xlu0 %41, %v35
    %v43 = vpop.permute.xlu0 %42
    %44 = vset.pattern.permute.xlu0 0
    %45 = vperm.xlu0 %44, %v36
    %v46 = vpop.permute.xlu0 %45
    %vm47 = vcmp.eq.s32.totalorder %v40, %v43
    %vm48 = vcmp.eq.s32.totalorder %v40, %v46
    %v49 = vadd.s32 %v37, 65
    %v50 = vadd.s32 %v38, 65
    %51 = vset.pattern.permute.xlu0 0
    %52 = vperm.xlu0 %51, %v49
    %v53 = vpop.permute.xlu0 %52
    %54 = vset.pattern.permute.xlu0 0
    %55 = vperm.xlu0 %54, %v50
    %v56 = vpop.permute.xlu0 %55
    %vm57 = vcmp.eq.s32.totalorder %v40, %v53
    %vm58 = vcmp.eq.s32.totalorder %v40, %v56
    %vm59 = vmor %vm47, %vm57
    %vm60 = vmor %vm48, %vm58
    %v61 = vsel %vm59, 1, 0
    %v62 = vsel %vm60, 1, 0
    %v63 = vcvt.s32.f32 %v61
    %v64 = vcvt.s32.f32 %v62
    %v65 = vpack.c.bf16 %v64, %v63
    %v66 = vld [vmem:[#allocation2] sm:$0xf]
    %v67 = vld [vmem:[#allocation2 + $0x4] sm:$0xf]
    %v68 = vld [vmem:[#allocation2 + $0x8] sm:$0xf]
    %v69 = vld [vmem:[#allocation2 + $0xc] sm:$0xf]
    %v70 = vld [vmem:[#allocation2 + $0x10] sm:$0xf]
    %v71 = vld [vmem:[#allocation2 + $0x14] sm:$0xf]
    %v72 = vld [vmem:[#allocation2 + $0x18] sm:$0xf]
    %v73 = vld [vmem:[#allocation2 + $0x1c] sm:$0xf]
    %v74 = vld [vmem:[#allocation2 + $0x20] sm:$0xf]
    %v75 = vld [vmem:[#allocation2 + $0x24] sm:$0xf]
    %v76 = vld [vmem:[#allocation2 + $0x28] sm:$0xf]
    %v77 = vld [vmem:[#allocation2 + $0x2c] sm:$0xf]
    %v78 = vld [vmem:[#allocation2 + $0x30] sm:$0xf]
    %v79 = vld [vmem:[#allocation2 + $0x34] sm:$0xf]
    %v80 = vld [vmem:[#allocation2 + $0x38] sm:$0xf]
    %v81 = vld [vmem:[#allocation2 + $0x3c] sm:$0xf]
    %v98 = vunpack.c.l.b16 %v66
    %v99 = vunpack.c.l.b16 %v67
    %v100 = vunpack.c.l.b16 %v68
    %v101 = vunpack.c.l.b16 %v69
    %v102 = vunpack.c.l.b16 %v70
    %v103 = vunpack.c.l.b16 %v71
    %v104 = vunpack.c.l.b16 %v72
    %v105 = vunpack.c.l.b16 %v73
    %v106 = vunpack.c.l.b16 %v74
    %v107 = vunpack.c.l.b16 %v75
    %v108 = vunpack.c.l.b16 %v76
    %v109 = vunpack.c.l.b16 %v77
    %v110 = vunpack.c.l.b16 %v78
    %v111 = vunpack.c.l.b16 %v79
    %v112 = vunpack.c.l.b16 %v80
    %v113 = vunpack.c.l.b16 %v81
    %v114 = vpack.c.b16 %v99, %v98
    %v115 = vpack.c.b16 %v101, %v100
    %v116 = vpack.c.b16 %v103, %v102
    %v117 = vpack.c.b16 %v105, %v104
    %v118 = vpack.c.b16 %v107, %v106
    %v119 = vpack.c.b16 %v109, %v108
    %v120 = vpack.c.b16 %v111, %v110
    %v121 = vpack.c.b16 %v113, %v112
    %130 = vmatprep.subr.bf16.mxu0 0
    %131 = vmatpush1.bf16.msra.mxu0 %v121
    %132 = vmatprep.subr.bf16.mxu0 0
    %133 = vmatpush1.bf16.msra.mxu0 %v120
    %134 = vmatprep.subr.bf16.mxu0 0
    %135 = vmatpush1.bf16.msra.mxu0 %v119
    %136 = vmatprep.subr.bf16.mxu0 0
    %137 = vmatpush1.bf16.msra.mxu0 %v118
    %138 = vmatprep.subr.bf16.mxu0 0
    %139 = vmatpush1.bf16.msra.mxu0 %v117
    %140 = vmatprep.subr.bf16.mxu0 0
    %141 = vmatpush1.bf16.msra.mxu0 %v116
    %142 = vmatprep.subr.bf16.mxu0 0
    %143 = vmatpush1.bf16.msra.mxu0 %v115
    %144 = vmatprep.subr.bf16.mxu0 0
    %145 = vmatpush1.bf16.msra.mxu0 %v114
    %146 = vmatprep.subr.bf16.mxu0 0
    %147 = vmatpush2.bf16.msra.mxu0 0
    %148 = vmatprep.subr.bf16.mxu0 0
    %149 = vmatpush2.bf16.msra.mxu0 0
    %150 = vmatprep.subr.bf16.mxu0 0
    %151 = vmatpush2.bf16.msra.mxu0 0
    %152 = vmatprep.subr.bf16.mxu0 0
    %153 = vmatpush2.bf16.msra.mxu0 0
    %154 = vmatprep.subr.bf16.mxu0 0
    %155 = vmatpush2.bf16.msra.mxu0 0
    %156 = vmatprep.subr.bf16.mxu0 0
    %157 = vmatpush2.bf16.msra.mxu0 0
    %158 = vmatprep.subr.bf16.mxu0 0
    %159 = vmatpush2.bf16.msra.mxu0 0
    %160 = vmatprep.subr.bf16.mxu0 0
    %161 = vmatpush2.bf16.msra.mxu0 0
    %162 = vmatprep.mubr.bf16.mxu0 0
    %163 = vmatmul.mubr.bf16.gmra.mxu0 %v65
    %v164 = vpop.f32.mrf.mxu0
    %v165 = vadd.f32 0.0, %v164
    %v166 = vpop.f32.mrf.mxu0
    %v167 = vpop.f32.mrf.mxu0
    %v168 = vadd.f32 0.0, %v167
    %v169 = vpop.f32.mrf.mxu0
    %170 = vdwg.mxu0
    %171 = vst [vmem:[#allocation5] sm:$0xff] %v165
    %172 = vst [vmem:[#allocation5 + $0x8] sm:$0xff] %v168
    %173 = vmax.xlane.f32.xlu0 %v165
    %v174 = vpop.xlane.xlu0 %173
    %175 = vmax.xlane.f32.xlu0 %v168
    %v176 = vpop.xlane.xlu0 %175
    %v177 = vsub.f32 %v165, %v174
    %v178 = vsub.f32 %v168, %v176
    %v179 = vmul.f32 %v177, 1.442695
    %v180 = vpow.pop %v179
    %v181 = vmul.f32 %v178, 1.442695
    %v182 = vpow.pop %v181
    %183 = vadd.xlane.f32.xlu0 %v180
    %v184 = vpop.xlane.xlu0 %183
    %185 = vadd.xlane.f32.xlu0 %v182
    %v186 = vpop.xlane.xlu0 %185
    %v187 = vlog2.pop %v184
    %v188 = vmul.f32 %v187, 0.6931472
    %v189 = vlog2.pop %v186
    %v190 = vmul.f32 %v189, 0.6931472
    %v191 = vadd.f32 %v174, %v188
    %v192 = vadd.f32 %v176, %v190
    %v193 = vld [vmem:[%s1] sm:$0xff]
    %v194 = vld [vmem:[%s1 + $0x8] sm:$0xff]
    %195 = vset.pattern.permute.xlu0 0
    %196 = vperm.xlu0 %195, %v193
    %v197 = vpop.permute.xlu0 %196
    %198 = vset.pattern.permute.xlu0 0
    %199 = vperm.xlu0 %198, %v194
    %v200 = vpop.permute.xlu0 %199
    %vm201 = vcmp.eq.s32.totalorder %v40, %v197
    %vm202 = vcmp.eq.s32.totalorder %v40, %v200
    %v203 = vsel %vm201, 1, 0
    %v204 = vsel %vm202, 1, 0
    %v205 = vcvt.s32.f32 %v203
    %v206 = vcvt.s32.f32 %v204
    %v207 = vmul.f32 %v205, %v165
    %v208 = vmul.f32 %v206, %v168
    %209 = vadd.xlane.f32.xlu0 %v207
    %v210 = vpop.xlane.xlu0 %209
    %211 = vadd.xlane.f32.xlu0 %v208
    %v212 = vpop.xlane.xlu0 %211
    %v213 = vsub.f32 %v191, %v210
    %v214 = vsub.f32 %v192, %v212
    %vm215 = vcmask 7168
    %216 = vst.msk [vmem:[%s5] sm:$0xff] %vm215, %v213
    %217 = vst.msk [vmem:[%s5 + $0x8] sm:$0xff] %vm215, %v214
    // Predicated region
    $region22: #{tpu_custom_call.1} parent=1 // pred_check
      _
    $region23: #{tpu_custom_call.1} parent=1 // pred_check_branch
      %219 = sbr.rel (0) target = $region25
    $region24: #{tpu_custom_call.1} parent=1 // pred_region
      %s221 = ssub.s32 256, 256
      %222 = vsyncadd [#allocation4], %s221
      %s223 = sshll.u32 [#allocation5], 4
      %s224 = int_to_ptr.vmem [resolvable:$true] %s223
      %229 = dma.vmem_to_hbm [thread:$0]  %s224, 256, %s4, [#allocation4], 128, 128, 8
    $region25: #{tpu_custom_call.1} parent=1 // pred_fallthru
      _
    // Predicated region
    $region26: #{tpu_custom_call.1} parent=1 // pred_check
      _
    $region27: #{tpu_custom_call.1} parent=1 // pred_check_branch
      %231 = sbr.rel (0) target = $region29
    $region28: #{tpu_custom_call.1} parent=1 // pred_region
      _
    $region29: #{tpu_custom_call.1} parent=1 // pred_fallthru
      _
    // Predicated region
    $region30: #{tpu_custom_call.1} parent=1 // pred_check
      _
    $region31: #{tpu_custom_call.1} parent=1 // pred_check_branch
      %233 = sbr.rel (0) target = $region33
    $region32: #{tpu_custom_call.1} parent=1 // pred_region
      %234 = dma.done [#allocation4], 256
    $region33: #{tpu_custom_call.1} parent=1 // pred_fallthru
      _
    // Predicated region
    $region34: #{tpu_custom_call.1} parent=1 // pred_check
      _
    $region35: #{tpu_custom_call.1} parent=1 // pred_check_branch
      %236 = sbr.rel (0) target = $region37
    $region36: #{tpu_custom_call.1} parent=1 // pred_region
      _
    $region37: #{tpu_custom_call.1} parent=1 // pred_fallthru
      _
    %237 = vsyncpa [#allocation3], 1
    %238 = vsyncpa [#allocation4], 1

</llo_original>
